<compile_context>
chip_gen: v7x
topology: tpu7x:2x2x1
jax: 0.10.0
libtpu: 0.0.40
codegen_flags: <defaults>
</compile_context>

<pallas_src>
import functools

import jax
import jax.numpy as jnp
from jax.experimental import pallas as pl
from jax.experimental.pallas import tpu as pltpu

EPS = 1e-5            # BatchNorm eps (torch default)
NEG_SLOPE = 0.01      # LeakyReLU default negative slope
LANE = 128            # TPU lane width
MATMUL_DTYPE = jnp.bfloat16


def _round_up(n, m):
    return ((n + m - 1) // m) * m


def _pad2(a, rows, cols):
    return jnp.pad(a, ((0, rows - a.shape[0]), (0, cols - a.shape[1])))


def _select_tiling():
    """Generation-aware tile / VMEM-limit selection.

    128 MiB VMEM parts (v5e/v6e): 512-wide row & contraction tiles, ~100 MiB
    scoped VMEM (the adjacency stream is HBM-bound; bigger tiles buy BW).
    64 MiB parts (v7x): 256-row tiles, 48 MiB limit.  VMEM ledger at 512x512
    tiles: a 2x768 KiB + msg 2x384 KiB + h 2x128 KiB + deg_inv 2x256 KiB +
    out 2x128 KiB + f32 acc 256 KiB + weights  ->  < 4 MiB total.
    """
    vmem_cap = 64 << 20
    try:
        vmem_cap = int(pltpu.get_tpu_info().vmem_capacity_bytes)
    except Exception:
        pass
    if vmem_cap >= (100 << 20):
        return 512, 512, 100 << 20
    return 256, 512, 48 << 20


MAX_TILE_N, MAX_TILE_K, VMEM_LIMIT_BYTES = _select_tiling()


def _mosaic_params(semantics):
    return pltpu.CompilerParams(
        dimension_semantics=semantics,
        vmem_limit_bytes=VMEM_LIMIT_BYTES,
    )


# ----------------------------------------------------------------------------
# Kernels
# ----------------------------------------------------------------------------
def _linear_kernel(x_ref, w_ref, b_ref, o_ref, *, activation):
    """Row-tiled dense layer: o = act(x_tile @ W + b). bf16 operands, f32 acc."""
    acc = jnp.dot(x_ref[...], w_ref[...], preferred_element_type=jnp.float32)
    acc = acc + b_ref[...]
    if activation == "sigmoid":
        # EUP-side approximate reciprocal: co-issues with VPU/MXU work.
        acc = pl.reciprocal(1.0 + jnp.exp(-acc), approx=True)
    o_ref[...] = acc.astype(o_ref.dtype)


def _msg_kernel(h_ref, w_ref, o_ref, *, num_relations):
    """Per-relation message projection: o[r] = h_tile @ W_r (no bias)."""
    for r in range(num_relations):
        o_ref[r] = jnp.dot(h_ref[...], w_ref[r],
                           preferred_element_type=jnp.float32).astype(o_ref.dtype)


def _rgcn_layer_kernel(h_ref, a_ref, msg_ref, dinv_ref, root_ref, b_ref,
                       o_ref, acc_ref, *, num_relations):
    """K-tiled RGCNConv (+ folded BatchNorm) + LeakyReLU.

    grid = (row tiles [parallel], source-node k tiles [arbitrary]).
      k == 0   : acc  = h_tile @ root_folded
      every k  : acc += sum_r deg_inv[:, r] * (counts_r_tile @ msg_r_ktile)
      k == last: out  = leaky_relu(acc + bias_folded)
    Edge counts are exact small integers stored as int8 in HBM and cast to
    bf16 just before the MXU dot; deg_inv is f32, so mean aggregation is more
    accurate than streaming pre-normalized bf16 1/deg values.
    """
    k = pl.program_id(1)

    @pl.when(k == 0)
    def _():
        acc_ref[...] = jnp.dot(h_ref[...], root_ref[...],
                               preferred_element_type=jnp.float32)

    dinv = dinv_ref[...]
    acc = acc_ref[...]
    for r in range(num_relations):
        part = jnp.dot(a_ref[r].astype(MATMUL_DTYPE), msg_ref[r],
                       preferred_element_type=jnp.float32)
        acc = acc + dinv[:, r:r + 1] * part
    acc_ref[...] = acc

    @pl.when(k == pl.num_programs(1) - 1)
    def _():
        out = acc_ref[...] + b_ref[...]
        o_ref[...] = jnp.where(out > 0, out, NEG_SLOPE * out).astype(o_ref.dtype)


# ----------------------------------------------------------------------------
# pallas_call wrappers
# ----------------------------------------------------------------------------
def _linear(x, w, b, *, tile_n, out_dtype, activation=None):
    n, kdim = x.shape
    m = w.shape[1]
    return pl.pallas_call(
        functools.partial(_linear_kernel, activation=activation),
        out_shape=jax.ShapeDtypeStruct((n, m), out_dtype),
        grid_spec=pltpu.PrefetchScalarGridSpec(
            num_scalar_prefetch=0,
            grid=(n // tile_n,),
            in_specs=[
                pl.BlockSpec((tile_n, kdim), lambda i: (i, 0)),  # activation tile
                pl.BlockSpec((kdim, m), lambda i: (0, 0)),       # weight (resident)
                pl.BlockSpec((1, m), lambda i: (0, 0)),          # bias   (resident)
            ],
            out_specs=pl.BlockSpec((tile_n, m), lambda i: (i, 0)),
        ),
        compiler_params=_mosaic_params(("parallel",)),
    )(x, w, b)


def _relation_messages(h, rel_w, *, tile_n):
    n, hp = h.shape
    num_rel = rel_w.shape[0]
    return pl.pallas_call(
        functools.partial(_msg_kernel, num_relations=num_rel),
        out_shape=jax.ShapeDtypeStruct((num_rel, n, hp), h.dtype),
        grid_spec=pltpu.PrefetchScalarGridSpec(
            num_scalar_prefetch=0,
            grid=(n // tile_n,),
            in_specs=[
                pl.BlockSpec((tile_n, hp), lambda i: (i, 0)),
                pl.BlockSpec((num_rel, hp, hp), lambda i: (0, 0, 0)),
            ],
            out_specs=pl.BlockSpec((num_rel, tile_n, hp), lambda i: (0, i, 0)),
        ),
        compiler_params=_mosaic_params(("parallel",)),
    )(h, rel_w)


def _rgcn_layer(h, counts, msg, deg_inv, root, bias, *, tile_n, tile_k):
    n, hp = h.shape
    num_rel = counts.shape[0]
    return pl.pallas_call(
        functools.partial(_rgcn_layer_kernel, num_relations=num_rel),
        out_shape=jax.ShapeDtypeStruct((n, hp), h.dtype),
        grid_spec=pltpu.PrefetchScalarGridSpec(
            num_scalar_prefetch=0,
            grid=(n // tile_n, n // tile_k),
            in_specs=[
                pl.BlockSpec((tile_n, hp), lambda i, k: (i, 0)),            # h row tile
                pl.BlockSpec((num_rel, tile_n, tile_k), lambda i, k: (0, i, k)),  # int8 counts
                pl.BlockSpec((num_rel, tile_k, hp), lambda i, k: (0, k, 0)),      # messages
                pl.BlockSpec((tile_n, LANE), lambda i, k: (i, 0)),          # 1/deg (f32)
                pl.BlockSpec((hp, hp), lambda i, k: (0, 0)),                # BN-folded root
                pl.BlockSpec((1, hp), lambda i, k: (0, 0)),                 # BN-folded bias
            ],
            out_specs=pl.BlockSpec((tile_n, hp), lambda i, k: (i, 0)),
            scratch_shapes=[pltpu.VMEM((tile_n, hp), jnp.float32)],
        ),
        compiler_params=_mosaic_params(("parallel", "arbitrary")),
    )(h, counts, msg, deg_inv, root, bias)


# ----------------------------------------------------------------------------
# Graph densification (JAX glue) -- hoist/cache this for static graphs.
# ----------------------------------------------------------------------------
def build_relational_graph(edge_index, edge_type, n_pad, num_relations):
    """int8 per-relation edge counts + lane-padded f32 inverse degrees.

    counts[r, i, j] = #edges j -> i of relation r   (exact small ints, int8)
    deg_inv[i, r]   = 1 / sum_j counts[r, i, j]     (0 where the degree is 0)
    Built with a single scatter-add each; no dense f32 [N, N, R] intermediate
    and no normalize / reshape / cast passes over the O(R*N^2) tensor.
    """
    src, dst = edge_index[0], edge_index[1]
    ones8 = jnp.ones(src.shape, jnp.int8)
    counts = jnp.zeros((num_relations, n_pad, n_pad), jnp.int8)
    counts = counts.at[edge_type, dst, src].add(ones8)
    deg = jnp.zeros((n_pad, num_relations), jnp.float32)
    deg = deg.at[dst, edge_type].add(1.0)
    deg_inv = jnp.where(deg > 0, 1.0 / jnp.maximum(deg, 1.0), 0.0)
    deg_inv = jnp.pad(deg_inv, ((0, 0), (0, LANE - num_relations)))
    return counts, deg_inv


# ----------------------------------------------------------------------------
# Full forward
# ----------------------------------------------------------------------------
def rgcn_model_forward(params, x, edge_index, edge_type, num_nodes, num_relations):
    num_features, hidden = params["w1"].shape
    R = num_relations
    assert R <= LANE

    f_pad = _round_up(num_features, LANE)
    h_pad = _round_up(hidden, LANE)

    base = _round_up(num_nodes, LANE)
    tile_k = min(MAX_TILE_K, base)
    n_pad = _round_up(base, tile_k)
    tile_n = min(MAX_TILE_N, n_pad)
    while n_pad % tile_n:            # largest multiple of LANE dividing n_pad
        tile_n -= LANE
    if n_pad // tile_n < 2:          # give both v7x TensorCores a row tile
        tile_n = n_pad // 2

    # ---- algebraic folds (constants in eval mode) ---------------------------
    scale = params["bn_gamma"] * jax.lax.rsqrt(params["bn_var"] + EPS)   # [1, H]
    shift = params["bn_beta"] - params["bn_mean"] * scale
    root_f = params["root"] * scale                   # scale output columns
    rel_w_f = params["rel_w"] * scale                 # [R, H, H] * [1, H]
    conv_b_f = params["conv_b"] * scale + shift       # [1, H]
    w_out = params["w2"] @ params["wo"]               # [H, 1]  (linear2 o linearO)
    b_out = params["b2"] @ params["wo"] + params["bo"]

    # ---- pad to MXU/lane-friendly shapes, cast matmul operands to bf16 ------
    w1 = _pad2(params["w1"], f_pad, h_pad).astype(MATMUL_DTYPE)
    b1 = _pad2(params["b1"], 1, h_pad)
    root_p = _pad2(root_f, h_pad, h_pad).astype(MATMUL_DTYPE)
    rel_w_p = jnp.stack(
        [_pad2(rel_w_f[r], h_pad, h_pad) for r in range(R)]).astype(MATMUL_DTYPE)
    conv_b_p = _pad2(conv_b_f, 1, h_pad)
    w_out_p = _pad2(w_out, h_pad, LANE).astype(MATMUL_DTYPE)       # lane-dense out
    b_out_p = _pad2(b_out, 1, LANE)

    x_p = _pad2(x, n_pad, f_pad).astype(MATMUL_DTYPE)
    counts, deg_inv = build_relational_graph(edge_index, edge_type, n_pad, R)

    # ---- forward through the Pallas kernels ---------------------------------
    # linear1 (dropout is identity in eval mode)
    h = _linear(x_p, w1, b1, tile_n=tile_n, out_dtype=MATMUL_DTYPE)

    # [RGCNConv -> BN -> LeakyReLU] x2 (shared weights, as in the module)
    for _ in range(2):
        msg = _relation_messages(h, rel_w_p, tile_n=tile_n)       # [R, N_pad, H_pad]
        h = _rgcn_layer(h, counts, msg, deg_inv, root_p, conv_b_p,
                        tile_n=tile_n, tile_k=tile_k)

    # fused linear2 @ linearO + sigmoid, lane-dense bf16 padded output
    o = _linear(h, w_out_p, b_out_p, tile_n=tile_n,
                out_dtype=MATMUL_DTYPE, activation="sigmoid")
    return o[:num_nodes, :1].astype(jnp.float32)


# ----------------------------------------------------------------------------
# Parameters & pure-JAX reference
# ----------------------------------------------------------------------------
def init_params(key, num_features, hidden, num_relations):
    ks = jax.random.split(key, 12)

    def u(k, shape, fan_in):
        bound = 1.0 / jnp.sqrt(float(fan_in))
        return jax.random.uniform(k, shape, jnp.float32, -bound, bound)

    return {
        # linear1 (stored [in, out], transposed vs torch's [out, in])
        "w1": u(ks[0], (num_features, hidden), num_features),
        "b1": u(ks[1], (1, hidden), num_features),
        # RGCNConv: per-relation weight [R, H, H], root [H, H], bias [1, H]
        "rel_w": u(ks[2], (num_relations, hidden, hidden), hidden),
        "root": u(ks[3], (hidden, hidden), hidden),
        "conv_b": jnp.zeros((1, hidden), jnp.float32),
        # BatchNorm (eval mode, running stats). Non-trivial values so the BN
        # fold is actually exercised.
        "bn_gamma": jax.random.uniform(ks[4], (1, hidden), jnp.float32, 0.5, 1.5),
        "bn_beta": 0.1 * jax.random.normal(ks[5], (1, hidden), jnp.float32),
        "bn_mean": 0.1 * jax.random.normal(ks[6], (1, hidden), jnp.float32),
        "bn_var": jax.random.uniform(ks[7], (1, hidden), jnp.float32, 0.5, 1.5),
        # linear2 / linearO
        "w2": u(ks[8], (hidden, hidden), hidden),
        "b2": u(ks[9], (1, hidden), hidden),
        "wo": u(ks[10], (hidden, 1), hidden),
        "bo": u(ks[11], (1, 1), hidden),
    }


def reference_forward(params, x, edge_index, edge_type, num_nodes, num_relations):
    """Pure-JAX f32 reference implementing the original module math."""
    src, dst = edge_index[0], edge_index[1]
    cnt = jnp.zeros((num_relations, num_nodes, num_nodes), jnp.float32)
    cnt = cnt.at[edge_type, dst, src].add(1.0)
    deg = cnt.sum(axis=2, keepdims=True)
    adj = jnp.where(deg > 0, cnt / jnp.maximum(deg, 1.0), 0.0)

    def block(h):
        out = h @ params["root"] + params["conv_b"]
        for r in range(num_relations):
            out = out + adj[r] @ (h @ params["rel_w"][r])
        inv = jax.lax.rsqrt(params["bn_var"] + EPS)
        out = (out - params["bn_mean"]) * inv * params["bn_gamma"] + params["bn_beta"]
        return jnp.where(out > 0, out, NEG_SLOPE * out)

    h = x @ params["w1"] + params["b1"]
    h = block(h)
    h = block(h)
    h = h @ params["w2"] + params["b2"]
    return jax.nn.sigmoid(h @ params["wo"] + params["bo"])


if __name__ == "__main__":
    NUM_NODES = 16
    NUM_FEATURES = 8
    HIDDEN = 32
    NUM_RELATIONS = 3
    NUM_EDGES = 40

    key = jax.random.PRNGKey(0)
    k_param, k_x, k_src, k_dst, k_rel = jax.random.split(key, 5)

    params = init_params(k_param, NUM_FEATURES, HIDDEN, NUM_RELATIONS)
    x = jax.random.normal(k_x, (NUM_NODES, NUM_FEATURES), jnp.float32)
    edge_index = jnp.stack([
        jax.random.randint(k_src, (NUM_EDGES,), 0, NUM_NODES),
        jax.random.randint(k_dst, (NUM_EDGES,), 0, NUM_NODES),
    ])
    edge_type = jax.random.randint(k_rel, (NUM_EDGES,), 0, NUM_RELATIONS)

    out = rgcn_model_forward(params, x, edge_index, edge_type,
                             NUM_NODES, NUM_RELATIONS)
    out = jax.block_until_ready(out)

    ref = reference_forward(params, x, edge_index, edge_type,
                            NUM_NODES, NUM_RELATIONS)
    assert out.shape == (NUM_NODES, 1)
    # bf16 matmul operands / bf16 output store + approximate-reciprocal sigmoid
    # vs an f32 reference: tolerance widened accordingly.
    assert jnp.allclose(out, ref, atol=5e-2), (
        "Pallas kernel mismatch vs JAX reference: "
        f"max |diff| = {float(jnp.max(jnp.abs(out - ref)))}")

    print("KERNEL_OK")
</pallas_src>

<mosaic_0001>
module attributes {stable_mosaic.version = 11 : i64} {
  func.func @_linear_kernel(%arg0: i32, %arg1: memref<64x128xbf16, #tpu.memory_space<vmem>>, %arg2: memref<128x128xbf16, #tpu.memory_space<vmem>>, %arg3: memref<1x128xf32, #tpu.memory_space<vmem>>, %arg4: memref<64x128xbf16, #tpu.memory_space<vmem>>) attributes {dimension_semantics = [#tpu.dimension_semantics<parallel>], iteration_bounds = array<i64: 2>, scalar_prefetch = 0 : i64, scratch_operands = 0 : i64, tpu.core_type = #tpu.core_type<tc>, window_params = [{transform_indices = @transform_0, window_bounds = array<i64: 64, 128>}, {pipeline_mode = #tpu.pipeline_mode<synchronous>, transform_indices = @transform_1, window_bounds = array<i64: 128, 128>}, {pipeline_mode = #tpu.pipeline_mode<synchronous>, transform_indices = @transform_2, window_bounds = array<i64: 1, 128>}, {transform_indices = @transform_3, window_bounds = array<i64: 64, 128>}]} {
    %c0 = arith.constant 0 : index
    %c0_0 = arith.constant 0 : index
    %0 = vector.load %arg1[%c0, %c0_0] : memref<64x128xbf16, #tpu.memory_space<vmem>>, vector<64x128xbf16>
    %c0_1 = arith.constant 0 : index
    %c0_2 = arith.constant 0 : index
    %1 = vector.load %arg2[%c0_1, %c0_2] : memref<128x128xbf16, #tpu.memory_space<vmem>>, vector<128x128xbf16>
    %cst = arith.constant dense<0.000000e+00> : vector<64x128xf32>
    %2 = tpu.matmul %0, %1, %cst {dimension_numbers = #tpu.dot_dimension_numbers<[1], [0], [0], [1], [0, 0, 1, 1], [], []>} : vector<64x128xbf16>, vector<128x128xbf16>, vector<64x128xf32> -> vector<64x128xf32>
    %c0_3 = arith.constant 0 : index
    %c0_4 = arith.constant 0 : index
    %3 = vector.load %arg3[%c0_3, %c0_4] : memref<1x128xf32, #tpu.memory_space<vmem>>, vector<1x128xf32>
    %4 = vector.broadcast %3 : vector<1x128xf32> to vector<64x128xf32>
    %5 = arith.addf %2, %4 : vector<64x128xf32>
    %6 = arith.truncf %5 : vector<64x128xf32> to vector<64x128xbf16>
    %c0_5 = arith.constant 0 : index
    %c0_6 = arith.constant 0 : index
    %7 = vector.load %arg4[%c0_5, %c0_6] : memref<64x128xbf16, #tpu.memory_space<vmem>>, vector<64x128xbf16>
    tpu.vector_store %arg4[%c0_5, %c0_6], %6 {strides = array<i32>} : memref<64x128xbf16, #tpu.memory_space<vmem>>, vector<64x128xbf16>,
    return
  }
  func.func @transform_0(%arg0: i32) -> (i32, i32) {
    %c0_i32 = arith.constant 0 : i32
    %c0_i32_0 = arith.constant 0 : i32
    return %arg0, %c0_i32 : i32, i32
  }
  func.func @transform_1(%arg0: i32) -> (i32, i32) {
    %c0_i32 = arith.constant 0 : i32
    %c0_i32_0 = arith.constant 0 : i32
    %c0_i32_1 = arith.constant 0 : i32
    return %c0_i32, %c0_i32_0 : i32, i32
  }
  func.func @transform_2(%arg0: i32) -> (i32, i32) {
    %c0_i32 = arith.constant 0 : i32
    %c0_i32_0 = arith.constant 0 : i32
    %c0_i32_1 = arith.constant 0 : i32
    return %c0_i32, %c0_i32_0 : i32, i32
  }
  func.func @transform_3(%arg0: i32) -> (i32, i32) {
    %c0_i32 = arith.constant 0 : i32
    %c0_i32_0 = arith.constant 0 : i32
    return %arg0, %c0_i32 : i32, i32
  }
}

</mosaic_0001>

<llo_original>
// kernel: tpu_custom_call.1
$region0: #{tpu_custom_call.1}
  #allocation0 [shape = 'u32[]', space=smem, size = 0x4, offset = 0x4, fixed_abs, tag = 'smem constant byte address 0x4 - core index']
  #allocation1 [shape = 'u32[144,128]{1,0:T(1,128)}', space=vmem, size = 0x12000, scoped, tag = 'internal scratch']
  %s0 = inlined_call_operand.hbm [shape: bf16[128,128], index: 0, kind: input, shape index: {}]
  %s1 = inlined_call_operand.hbm [shape: bf16[128,128], index: 1, kind: input, shape index: {}]
  %s2 = inlined_call_operand.vmem [shape: f32[1,128], index: 2, kind: input, shape index: {}]
  %s3 = inlined_call_operand.hbm [shape: bf16[128,128], index: 3, kind: output, shape index: {}]
  %s4 = sld [smem:[#allocation0]]
  $region53: #{tpu_custom_call.1} parent=0
    _
  %s6 = ssub.s32 1, %s4
  %s7 = scalar_select 0, %s6, %s4
  $region1: #{tpu_custom_call.1} parent=0
    #allocation2 [shape = 'u8[32768]{0}', space=vmem, size = 0x8000, scoped, tag = 'input window, operand 0']
    #allocation3 [shape = 's32[2]{0}', space=sflag, size = 0x8, scoped, tag = 'scoped memory for tpu_custom_call.1']
    #allocation4 [shape = 's32[2]{0}', space=sflag, size = 0x8, scoped, tag = 'scoped memory for tpu_custom_call.1']
    #allocation5 [shape = 'u8[32768]{0}', space=vmem, size = 0x8000, scoped, tag = 'input window, operand 1, single buffered']
    #allocation6 [shape = 's32[1]{0}', space=sflag, size = 0x4, scoped, tag = 'scoped memory for tpu_custom_call.1']
    #allocation7 [shape = 'u8[32768]{0}', space=vmem, size = 0x8000, scoped, tag = 'output window, operand 0']
    %8 = vsyncpa [#allocation3], 0
    %s9 = scalar_lea.sflag [#allocation3], 1
    %10 = vsyncpa %s9, 0
    %11 = vsyncpa [#allocation6], 0
    %12 = vsyncpa [#allocation4], 0
    %s13 = scalar_lea.sflag [#allocation4], 1
    %14 = vsyncpa %s13, 0
    loop: start=0, step=1, limit=4
    $region2: #{tpu_custom_call.1} parent=1 // loop_pre_header
      _
    $region3: #{tpu_custom_call.1} parent=1 // loop_header
      %s16 = sphi 0, %s20
      %p17 = scmp.ge.s32.totalorder %s16, 4
      %s26 = sphi 0, %s28
      %s29 = sphi 0, %s26
      %s30 = sphi 0, %s29
      %s46 = sphi 0, %s30
      %s50 = sphi 0, %s50
      %s52 = sphi 0, %s50
      %s53 = sphi 0, %s52
      %s67 = sphi 0, %s53
      %s71 = sphi 0, %s71
      %s73 = sphi 0, %s71
      %s74 = sphi 0, %s73
      %s88 = sphi 0, %s74
      %s94 = sphi 0, %s96
      %s97 = sphi 0, %s94
      %s98 = sphi 0, %s97
      %s114 = sphi 0, %s98
    $region4: #{tpu_custom_call.1} parent=1 // loop_header_branch
      %19 = sbr.rel (%p17) target = $region8
    $region5: #{tpu_custom_call.1} parent=1 // loop_body
      %s21 = ssub.s32 %s16, 1
      %s22 = ssub.s32 %s16, 2
      %s23 = sadd.s32 %s16, 1
      %s24 = ssub.s32 %s16, %s23
      %p25 = scmp.eq.s32.totalorder %s24, 0
      %s27 = sadd.s32 %s26, 1
      %s28 = scalar_select %p25, %s26, %s27
      %p31 = pneg %p25
      %p32 = scmp.eq.s32.totalorder %s16, 1
      %p33 = por %p31, %p32
      %p34 = scmp.ne.s32.totalorder %s26, %s29
      %p35 = scmp.eq.s32.totalorder %s16, 0
      %p36 = por %p34, %p35
      %p37 = scmp.ne.s32.totalorder %s26, %s29
      %p38 = scmp.eq.s32.totalorder %s21, 1
      %p39 = por %p37, %p38
      %p40 = scmp.ne.s32.totalorder %s29, %s30
      %p41 = scmp.eq.s32.totalorder %s21, 0
      %p42 = por %p40, %p41
      %p43 = scmp.ne.s32.totalorder %s29, %s30
      %p44 = scmp.eq.s32.totalorder %s22, 1
      %p45 = por %p43, %p44
      %p47 = scmp.ne.s32.totalorder %s30, %s46
      %p48 = scmp.eq.s32.totalorder %s22, 0
      %p49 = por %p47, %p48
      %s51 = sadd.s32 %s50, 1
      %p54 = scmp.eq.s32.totalorder %s16, 1
      %p55 = scmp.ne.s32.totalorder %s50, %s52
      %p56 = scmp.eq.s32.totalorder %s16, 0
      %p57 = por %p55, %p56
      %p58 = scmp.ne.s32.totalorder %s50, %s52
      %p59 = scmp.eq.s32.totalorder %s21, 1
      %p60 = por %p58, %p59
      %p61 = scmp.ne.s32.totalorder %s52, %s53
      %p62 = scmp.eq.s32.totalorder %s21, 0
      %p63 = por %p61, %p62
      %p64 = scmp.ne.s32.totalorder %s52, %s53
      %p65 = scmp.eq.s32.totalorder %s22, 1
      %p66 = por %p64, %p65
      %p68 = scmp.ne.s32.totalorder %s53, %s67
      %p69 = scmp.eq.s32.totalorder %s22, 0
      %p70 = por %p68, %p69
      %s72 = sadd.s32 %s71, 1
      %p75 = scmp.eq.s32.totalorder %s16, 1
      %p76 = scmp.ne.s32.totalorder %s71, %s73
      %p77 = scmp.eq.s32.totalorder %s16, 0
      %p78 = por %p76, %p77
      %p79 = scmp.ne.s32.totalorder %s71, %s73
      %p80 = scmp.eq.s32.totalorder %s21, 1
      %p81 = por %p79, %p80
      %p82 = scmp.ne.s32.totalorder %s73, %s74
      %p83 = scmp.eq.s32.totalorder %s21, 0
      %p84 = por %p82, %p83
      %p85 = scmp.ne.s32.totalorder %s73, %s74
      %p86 = scmp.eq.s32.totalorder %s22, 1
      %p87 = por %p85, %p86
      %p89 = scmp.ne.s32.totalorder %s74, %s88
      %p90 = scmp.eq.s32.totalorder %s22, 0
      %p91 = por %p89, %p90
      %s92 = ssub.s32 %s16, %s23
      %p93 = scmp.eq.s32.totalorder %s92, 0
      %s95 = sadd.s32 %s94, 1
      %s96 = scalar_select %p93, %s94, %s95
      %p99 = pneg %p93
      %p100 = scmp.eq.s32.totalorder %s16, 1
      %p101 = por %p99, %p100
      %p102 = scmp.ne.s32.totalorder %s94, %s97
      %p103 = scmp.eq.s32.totalorder %s16, 0
      %p104 = por %p102, %p103
      %p105 = scmp.ne.s32.totalorder %s94, %s97
      %p106 = scmp.eq.s32.totalorder %s21, 1
      %p107 = por %p105, %p106
      %p108 = scmp.ne.s32.totalorder %s97, %s98
      %p109 = scmp.eq.s32.totalorder %s21, 0
      %p110 = por %p108, %p109
      %p111 = scmp.ne.s32.totalorder %s97, %s98
      %p112 = scmp.eq.s32.totalorder %s22, 1
      %p113 = por %p111, %p112
      %p115 = scmp.ne.s32.totalorder %s98, %s114
      %p116 = scmp.eq.s32.totalorder %s22, 0
      %p117 = por %p115, %p116
      %p118 = scmp.le.s32.totalorder 1, %s16
      %p119 = scmp.lt.s32.totalorder %s16, 3
      %p120 = pnand %p118, %p119
      %p121 = pneg %p120
      // Predicated region
      $region9: #{tpu_custom_call.1} parent=5 // pred_check
        _
      $region10: #{tpu_custom_call.1} parent=5 // pred_check_branch
        %123 = sbr.rel (%p120) target = $region12
      $region11: #{tpu_custom_call.1} parent=5 // pred_region
        %s124 = ssub.s32 %s16, 1
        // Predicated region
        $region13: #{tpu_custom_call.1} parent=11 // pred_check
          %p125 = pneg %p63
        $region14: #{tpu_custom_call.1} parent=11 // pred_check_branch
          %127 = sbr.rel (%p125) target = $region16
        $region15: #{tpu_custom_call.1} parent=11 // pred_region
          %s129 = ssub.s32 1024, 1024
          %130 = vsyncadd [#allocation6], %s129
          %s131 = sshll.u32 [#allocation5], 4
          %s132 = int_to_ptr.vmem [resolvable:$true] %s131
          %137 = dma.hbm_to_vmem [thread:$0]  %s1, 1024, %s132, [#allocation6], 64, 64, 4
        $region16: #{tpu_custom_call.1} parent=11 // pred_fallthru
          _
        // Predicated region
        $region17: #{tpu_custom_call.1} parent=11 // pred_check
          %p138 = pneg %p84
        $region18: #{tpu_custom_call.1} parent=11 // pred_check_branch
          %140 = sbr.rel (%p138) target = $region20
        $region19: #{tpu_custom_call.1} parent=11 // pred_region
          _
        $region20: #{tpu_custom_call.1} parent=11 // pred_fallthru
          _
      $region12: #{tpu_custom_call.1} parent=5 // pred_fallthru
        _
      %p141 = scmp.lt.s32.totalorder %s16, 2
      // Predicated region
      $region21: #{tpu_custom_call.1} parent=5 // pred_check
        %p142 = pneg %p141
      $region22: #{tpu_custom_call.1} parent=5 // pred_check_branch
        %144 = sbr.rel (%p142) target = $region24
      $region23: #{tpu_custom_call.1} parent=5 // pred_region
        // Predicated region
        $region25: #{tpu_custom_call.1} parent=23 // pred_check
          %p145 = pneg %p36
        $region26: #{tpu_custom_call.1} parent=23 // pred_check_branch
          %147 = sbr.rel (%p145) target = $region28
        $region27: #{tpu_custom_call.1} parent=23 // pred_region
          %s148 = sand.u32 %s26, 1
          %s149 = scalar_lea.sflag [#allocation3], %s148
          %s150 = sand.u32 %s26, 1
          %s151 = smul.addr %s150, 32
          %s152 = scalar_lea.vmem [#allocation2], %s151
          %s153 = smul.u32 8, %s16
          %s155 = ssub.s32 512, 512
          %156 = vsyncadd %s149, %s155
          %s157 = smul.addr %s153, 64
          %s158 = scalar_lea.hbm %s0, %s157
          %s159 = sshll.u32 %s152, 4
          %s160 = int_to_ptr.vmem [resolvable:$true] %s159
          %165 = dma.hbm_to_vmem [thread:$0]  %s158, 512, %s160, %s149, 64, 64, 4
        $region28: #{tpu_custom_call.1} parent=23 // pred_fallthru
          _
      $region24: #{tpu_custom_call.1} parent=5 // pred_fallthru
        _
      %p166 = scmp.le.s32.totalorder 1, %s16
      %p167 = scmp.lt.s32.totalorder %s16, 3
      %p168 = pnand %p166, %p167
      %p169 = pneg %p168
      // Predicated region
      $region29: #{tpu_custom_call.1} parent=5 // pred_check
        _
      $region30: #{tpu_custom_call.1} parent=5 // pred_check_branch
        %171 = sbr.rel (%p168) target = $region32
      $region31: #{tpu_custom_call.1} parent=5 // pred_region
        %s172 = ssub.s32 %s16, 1
        %s173 = sand.u32 %s29, 1
        %s174 = scalar_lea.sflag [#allocation3], %s173
        %s175 = sand.u32 %s29, 1
        %s176 = smul.addr %s175, 32
        %s177 = scalar_lea.vmem [#allocation2], %s176
        // Predicated region
        $region33: #{tpu_custom_call.1} parent=31 // pred_check
          %p178 = pneg %p42
        $region34: #{tpu_custom_call.1} parent=31 // pred_check_branch
          %180 = sbr.rel (%p178) target = $region36
        $region35: #{tpu_custom_call.1} parent=31 // pred_region
          %181 = dma.done %s174, 512
        $region36: #{tpu_custom_call.1} parent=31 // pred_fallthru
          _
        // Predicated region
        $region37: #{tpu_custom_call.1} parent=31 // pred_check
          %p182 = pneg %p63
        $region38: #{tpu_custom_call.1} parent=31 // pred_check_branch
          %184 = sbr.rel (%p182) target = $region40
        $region39: #{tpu_custom_call.1} parent=31 // pred_region
          %185 = dma.done [#allocation6], 1024
        $region40: #{tpu_custom_call.1} parent=31 // pred_fallthru
          _
        %s186 = sand.u32 %s29, 1
        %s187 = scalar_lea.sflag [#allocation3], %s186
        %s188 = sand.u32 %s29, 1
        %s189 = smul.addr %s188, 32
        %s190 = scalar_lea.vmem [#allocation2], %s189
        %p191 = pneg %p42
        %p192 = pneg %p39
        %p193 = pneg %p63
        %p194 = pneg %p60
        %p195 = pneg %p84
        %p196 = pneg %p81
        %p197 = pneg %p110
        %p198 = pneg %p107
        %s199 = sand.u32 %s97, 1
        %s200 = scalar_lea.sflag [#allocation4], %s199
        %s201 = sand.u32 %s97, 1
        %s202 = smul.addr %s201, 32
        %s203 = scalar_lea.vmem [#allocation7], %s202
        %s204 = smul.u32 8, %s21
        %s205 = smul.u32 8, %s21
        %v207 = vld [vmem:[%s177] sm:$0xf]
        %v208 = vld [vmem:[%s177 + $0x4] sm:$0xf]
        %v209 = vld [vmem:[%s177 + $0x8] sm:$0xf]
        %v210 = vld [vmem:[%s177 + $0xc] sm:$0xf]
        %v211 = vld [vmem:[%s177 + $0x10] sm:$0xf]
        %v212 = vld [vmem:[%s177 + $0x14] sm:$0xf]
        %v213 = vld [vmem:[%s177 + $0x18] sm:$0xf]
        %v214 = vld [vmem:[%s177 + $0x1c] sm:$0xf]
        %v215 = vld [vmem:[#allocation5] sm:$0xf]
        %v216 = vld [vmem:[#allocation5 + $0x4] sm:$0xf]
        %v217 = vld [vmem:[#allocation5 + $0x8] sm:$0xf]
        %v218 = vld [vmem:[#allocation5 + $0xc] sm:$0xf]
        %v219 = vld [vmem:[#allocation5 + $0x10] sm:$0xf]
        %v220 = vld [vmem:[#allocation5 + $0x14] sm:$0xf]
        %v221 = vld [vmem:[#allocation5 + $0x18] sm:$0xf]
        %v222 = vld [vmem:[#allocation5 + $0x1c] sm:$0xf]
        %v223 = vld [vmem:[#allocation5 + $0x20] sm:$0xf]
        %v224 = vld [vmem:[#allocation5 + $0x24] sm:$0xf]
        %v225 = vld [vmem:[#allocation5 + $0x28] sm:$0xf]
        %v226 = vld [vmem:[#allocation5 + $0x2c] sm:$0xf]
        %v227 = vld [vmem:[#allocation5 + $0x30] sm:$0xf]
        %v228 = vld [vmem:[#allocation5 + $0x34] sm:$0xf]
        %v229 = vld [vmem:[#allocation5 + $0x38] sm:$0xf]
        %v230 = vld [vmem:[#allocation5 + $0x3c] sm:$0xf]
        %v231 = vld [vmem:[%s2] sm:$0x1]
        %v233 = vlaneseq
        %v234 = vshrl.u32 %v233, 7
        %v235 = vsub.s32 0, %v234
        %v236 = vrot.slane %v231, %v235
        %v246 = vunpack.c.l.b16 %v207
        %v247 = vunpack.c.l.b16 %v208
        %v248 = vunpack.c.l.b16 %v209
        %v249 = vunpack.c.l.b16 %v210
        %v250 = vunpack.c.l.b16 %v211
        %v251 = vunpack.c.l.b16 %v212
        %v252 = vunpack.c.l.b16 %v213
        %v253 = vunpack.c.l.b16 %v214
        %v254 = vpack.c.b16 %v247, %v246
        %v255 = vpack.c.b16 %v249, %v248
        %v256 = vpack.c.b16 %v251, %v250
        %v257 = vpack.c.b16 %v253, %v252
        %v278 = vunpack.c.l.b16 %v215
        %v279 = vunpack.c.l.b16 %v216
        %v280 = vunpack.c.l.b16 %v217
        %v281 = vunpack.c.l.b16 %v218
        %v282 = vunpack.c.l.b16 %v219
        %v283 = vunpack.c.l.b16 %v220
        %v284 = vunpack.c.l.b16 %v221
        %v285 = vunpack.c.l.b16 %v222
        %v286 = vunpack.c.l.b16 %v223
        %v287 = vunpack.c.l.b16 %v224
        %v288 = vunpack.c.l.b16 %v225
        %v289 = vunpack.c.l.b16 %v226
        %v290 = vunpack.c.l.b16 %v227
        %v291 = vunpack.c.l.b16 %v228
        %v292 = vunpack.c.l.b16 %v229
        %v293 = vunpack.c.l.b16 %v230
        %v294 = vpack.c.b16 %v279, %v278
        %v295 = vpack.c.b16 %v281, %v280
        %v296 = vpack.c.b16 %v283, %v282
        %v297 = vpack.c.b16 %v285, %v284
        %v298 = vpack.c.b16 %v287, %v286
        %v299 = vpack.c.b16 %v289, %v288
        %v300 = vpack.c.b16 %v291, %v290
        %v301 = vpack.c.b16 %v293, %v292
        %310 = vmatprep.subr.bf16.mxu0 0
        %311 = vmatpush1.bf16.msra.mxu0 %v294
        %312 = vmatprep.subr.bf16.mxu0 0
        %313 = vmatpush1.bf16.msra.mxu0 %v295
        %314 = vmatprep.subr.bf16.mxu0 0
        %315 = vmatpush1.bf16.msra.mxu0 %v296
        %316 = vmatprep.subr.bf16.mxu0 0
        %317 = vmatpush1.bf16.msra.mxu0 %v297
        %318 = vmatprep.subr.bf16.mxu0 0
        %319 = vmatpush1.bf16.msra.mxu0 %v298
        %320 = vmatprep.subr.bf16.mxu0 0
        %321 = vmatpush1.bf16.msra.mxu0 %v299
        %322 = vmatprep.subr.bf16.mxu0 0
        %323 = vmatpush1.bf16.msra.mxu0 %v300
        %324 = vmatprep.subr.bf16.mxu0 0
        %325 = vmatpush1.bf16.msra.mxu0 %v301
        %326 = vmatprep.subr.bf16.mxu0 0
        %327 = vmatpush1.bf16.msra.mxu0 0
        %328 = vmatprep.subr.bf16.mxu0 0
        %329 = vmatpush1.bf16.msra.mxu0 0
        %330 = vmatprep.subr.bf16.mxu0 0
        %331 = vmatpush1.bf16.msra.mxu0 0
        %332 = vmatprep.subr.bf16.mxu0 0
        %333 = vmatpush1.bf16.msra.mxu0 0
        %334 = vmatprep.subr.bf16.mxu0 0
        %335 = vmatpush1.bf16.msra.mxu0 0
        %336 = vmatprep.subr.bf16.mxu0 0
        %337 = vmatpush1.bf16.msra.mxu0 0
        %338 = vmatprep.subr.bf16.mxu0 0
        %339 = vmatpush1.bf16.msra.mxu0 0
        %340 = vmatprep.subr.bf16.mxu0 0
        %341 = vmatpush1.bf16.msra.mxu0 0
        %342 = vmatprep.mubr.bf16.mxu0 0
        %343 = vmatmul.mubr.bf16.gmra.mrb[0].mxu0 %v254
        %v344 = vpop.f32.mrb[0].mxu0
        %v345 = vadd.f32 %v236, %v344
        %v346 = vpop.f32.mrb[0].mxu0
        %v347 = vpop.f32.mrb[0].mxu0
        %v348 = vadd.f32 %v236, %v347
        %v349 = vpop.f32.mrb[0].mxu0
        %350 = vmatprep.mubr.bf16.mxu0 0
        %351 = vmatmul.mubr.bf16.gmra.mrb[0].mxu0 %v255
        %v352 = vpop.f32.mrb[0].mxu0
        %v353 = vadd.f32 %v236, %v352
        %v354 = vpop.f32.mrb[0].mxu0
        %v355 = vpop.f32.mrb[0].mxu0
        %v356 = vadd.f32 %v236, %v355
        %v357 = vpop.f32.mrb[0].mxu0
        %358 = vmatprep.mubr.bf16.mxu0 0
        %359 = vmatmul.mubr.bf16.gmra.mrb[0].mxu0 %v256
        %v360 = vpop.f32.mrb[0].mxu0
        %v361 = vadd.f32 %v236, %v360
        %v362 = vpop.f32.mrb[0].mxu0
        %v363 = vpop.f32.mrb[0].mxu0
        %v364 = vadd.f32 %v236, %v363
        %v365 = vpop.f32.mrb[0].mxu0
        %366 = vmatprep.mubr.bf16.mxu0 0
        %367 = vmatmul.mubr.bf16.gmra.mrb[0].mxu0 %v257
        %v368 = vpop.f32.mrb[0].mxu0
        %v369 = vadd.f32 %v236, %v368
        %v370 = vpop.f32.mrb[0].mxu0
        %v371 = vpop.f32.mrb[0].mxu0
        %v372 = vadd.f32 %v236, %v371
        %v373 = vpop.f32.mrb[0].mxu0
        %374 = vdwg.mxu0
        %v375 = vpack.c.bf16 %v348, %v345
        %v376 = vpack.c.bf16 %v356, %v353
        %v377 = vpack.c.bf16 %v364, %v361
        %v378 = vpack.c.bf16 %v372, %v369
        %v383 = vunpack.c.l.b16 %v375
        %v384 = vunpack.c.h.b16 %v375
        %v385 = vunpack.c.l.b16 %v376
        %v386 = vunpack.c.h.b16 %v376
        %v387 = vunpack.c.l.b16 %v377
        %v388 = vunpack.c.h.b16 %v377
        %v389 = vunpack.c.l.b16 %v378
        %v390 = vunpack.c.h.b16 %v378
        %v391 = vpack.c.b16 %v383, %v383
        %v392 = vpack.c.b16 %v384, %v384
        %v393 = vpack.c.b16 %v385, %v385
        %v394 = vpack.c.b16 %v386, %v386
        %v395 = vpack.c.b16 %v387, %v387
        %v396 = vpack.c.b16 %v388, %v388
        %v397 = vpack.c.b16 %v389, %v389
        %v398 = vpack.c.b16 %v390, %v390
        %407 = vst [vmem:[%s203] sm:$0xf] %v391
        %408 = vst [vmem:[%s203 + $0x4] sm:$0xf] %v392
        %409 = vst [vmem:[%s203 + $0x8] sm:$0xf] %v393
        %410 = vst [vmem:[%s203 + $0xc] sm:$0xf] %v394
        %411 = vst [vmem:[%s203 + $0x10] sm:$0xf] %v395
        %412 = vst [vmem:[%s203 + $0x14] sm:$0xf] %v396
        %413 = vst [vmem:[%s203 + $0x18] sm:$0xf] %v397
        %414 = vst [vmem:[%s203 + $0x1c] sm:$0xf] %v398
        %s415 = sand.u32 %s97, 1
        %s416 = scalar_lea.sflag [#allocation4], %s415
        %s417 = sand.u32 %s97, 1
        %s418 = smul.addr %s417, 32
        %s419 = scalar_lea.vmem [#allocation7], %s418
        // Predicated region
        $region41: #{tpu_custom_call.1} parent=31 // pred_check
          %p420 = pneg %p107
        $region42: #{tpu_custom_call.1} parent=31 // pred_check_branch
          %422 = sbr.rel (%p420) target = $region44
        $region43: #{tpu_custom_call.1} parent=31 // pred_region
          %s423 = smul.u32 8, %s21
          %s425 = ssub.s32 512, 512
          %426 = vsyncadd %s416, %s425
          %s427 = smul.addr %s423, 64
          %s428 = scalar_lea.hbm %s3, %s427
          %s429 = sshll.u32 %s419, 4
          %s430 = int_to_ptr.vmem [resolvable:$true] %s429
          %435 = dma.vmem_to_hbm [thread:$0]  %s430, 512, %s428, %s416, 64, 64, 4
        $region44: #{tpu_custom_call.1} parent=31 // pred_fallthru
          _
      $region32: #{tpu_custom_call.1} parent=5 // pred_fallthru
        _
      %p436 = scmp.le.s32.totalorder 2, %s16
      // Predicated region
      $region45: #{tpu_custom_call.1} parent=5 // pred_check
        %p437 = pneg %p436
      $region46: #{tpu_custom_call.1} parent=5 // pred_check_branch
        %439 = sbr.rel (%p437) target = $region48
      $region47: #{tpu_custom_call.1} parent=5 // pred_region
        %s440 = ssub.s32 %s16, 2
        // Predicated region
        $region49: #{tpu_custom_call.1} parent=47 // pred_check
          %p441 = pneg %p113
        $region50: #{tpu_custom_call.1} parent=47 // pred_check_branch
          %443 = sbr.rel (%p441) target = $region52
        $region51: #{tpu_custom_call.1} parent=47 // pred_region
          %s444 = sand.u32 %s98, 1
          %s445 = scalar_lea.sflag [#allocation4], %s444
          %s446 = sand.u32 %s98, 1
          %s447 = smul.addr %s446, 32
          %s448 = scalar_lea.vmem [#allocation7], %s447
          %449 = dma.done %s445, 512
        $region52: #{tpu_custom_call.1} parent=47 // pred_fallthru
          _
      $region48: #{tpu_custom_call.1} parent=5 // pred_fallthru
        _
    $region6: #{tpu_custom_call.1} parent=1 // loop_footer
      %s20 = sadd.s32 1, %s16
    $region7: #{tpu_custom_call.1} parent=1 // loop_footer_branch
      %15 = sbr.rel target = $region3
    $region8: #{tpu_custom_call.1} parent=1 // loop_exit
      _
    %450 = vsyncpa [#allocation3], 1
    %s451 = scalar_lea.sflag [#allocation3], 1
    %452 = vsyncpa %s451, 1
    %453 = vsyncpa [#allocation6], 1
    %454 = vsyncpa [#allocation4], 1
    %s455 = scalar_lea.sflag [#allocation4], 1
    %456 = vsyncpa %s455, 1

</llo_original>
